<compile_context>
chip_gen: v7x
topology: tpu7x:2x2x1
jax: 0.10.0
libtpu: 0.0.40
codegen_flags: <defaults>
</compile_context>

<pallas_src>
import functools

import jax
import jax.numpy as jnp
from jax.experimental import pallas as pl
from jax.experimental.pallas import tpu as pltpu

EPS = 1e-5
MOMENTUM = 0.997


def _cdiv(a, b):
    return (a + b - 1) // b


def _round_up(v, m):
    return (v + m - 1) // m * m


def _vmem_budget_bytes():
    """Generation-aware scoped-VMEM budget (~75% of physical VMEM).

    v7x: 64 MiB -> ~48 MiB; v5e/v6e: 128 MiB -> ~96 MiB.  Falls back to a
    64 MiB physical assumption (safe on every generation) if the query fails.
    """
    cap = 64 * 1024 * 1024
    try:
        info = pltpu.get_tpu_info()
        cap_q = getattr(info, "vmem_capacity_bytes", None)
        if cap_q:
            cap = int(cap_q)
    except Exception:
        pass
    return max(16 * 1024 * 1024, (cap * 3) // 4)


def _default_tile_n(c, vmem_limit):
    # Row-tile target ~4-8 MiB of f32 (past the measured roofline knee), bounded
    # by the scoped budget: ~8x the tile footprint covers double-buffered in/out
    # plus in-kernel f32 temporaries (v7x: 48 MiB / 8 -> 6 MiB tiles).
    tile_bytes = min(8 << 20, vmem_limit // 8)
    rows = tile_bytes // max(1, 4 * c)
    return max(8, (rows // 8) * 8)


# ----------------------------------------------------------------------------
# Kernels
# ----------------------------------------------------------------------------
def _fused_kernel(mix_ref, x_ref, w_ref, b_ref, rm_ref, rv_ref,
                  o_ref, nrm_ref, nrv_ref):
    """Single-block path: whole (N, C) resident in VMEM; x read from HBM once."""
    x = x_ref[...].astype(jnp.float32)
    n, c = x.shape
    xsq = x * x

    # NOTE: unbiased (/(C-1), /(N-1)) variances match torch.var() defaults used
    # by the reference module.  One-pass form; clamped at 0 against catastrophic
    # cancellation.  C==1 / N==1 are degenerate in PyTorch too (guarded here
    # only to avoid a trace-time division by zero).
    mean_ln = jnp.sum(x, axis=1, keepdims=True) * (1.0 / c)                 # (N, 1)
    var_ln = jnp.maximum(
        (jnp.sum(xsq, axis=1, keepdims=True) - c * mean_ln * mean_ln)
        * (1.0 / max(c - 1, 1)), 0.0)                                       # (N, 1)
    mean_bn = jnp.sum(x, axis=0, keepdims=True) * (1.0 / n)                 # (1, C)
    var_bn = jnp.maximum(
        (jnp.sum(xsq, axis=0, keepdims=True) - n * mean_bn * mean_bn)
        * (1.0 / max(n - 1, 1)), 0.0)                                       # (1, C)

    # Running-stat momentum update folded in: no extra dispatches / HBM trips.
    nrm_ref[...] = (MOMENTUM * rm_ref[...].astype(jnp.float32)
                    + (1.0 - MOMENTUM) * mean_bn).astype(nrm_ref.dtype)
    nrv_ref[...] = (MOMENTUM * rv_ref[...].astype(jnp.float32)
                    + (1.0 - MOMENTUM) * var_bn).astype(nrv_ref.dtype)

    mw0, mw1, vw0, vw1 = mix_ref[0], mix_ref[1], mix_ref[2], mix_ref[3]
    mean = mw0 * mean_ln + mw1 * mean_bn
    var = vw0 * var_ln + vw1 * var_bn
    x_hat = (x - mean) * jax.lax.rsqrt(var + EPS)
    o_ref[...] = (x_hat * w_ref[...].astype(jnp.float32)
                  + b_ref[...].astype(jnp.float32)).astype(o_ref.dtype)


def _bn_stats_kernel(x_ref, sum_ref, sumsq_ref, *, n_rows):
    """Tiled pass 1: per-core column sum / sum-of-squares over row tiles.

    Outer grid axis ("parallel") = TensorCore split; inner axis ("arbitrary") =
    resident accumulation over that core's row tiles.  Ragged tail rows are
    masked with row ids; the (at most one) clamped overhang tile on the second
    core is skipped entirely via pl.when — no wrapper-side padding of x.
    """
    core = pl.program_id(0)
    step = pl.program_id(1)
    steps_per_core = pl.num_programs(1)
    tile_n = x_ref.shape[0]

    @pl.when(step == 0)
    def _init():
        sum_ref[...] = jnp.zeros_like(sum_ref)
        sumsq_ref[...] = jnp.zeros_like(sumsq_ref)

    row0 = (core * steps_per_core + step) * tile_n

    @pl.when(row0 < n_rows)          # skip tiles past the end (clamped duplicates)
    def _accumulate():
        rows = row0 + jax.lax.broadcasted_iota(jnp.int32, (tile_n, 1), 0)
        x = x_ref[...].astype(jnp.float32)
        x = jnp.where(rows < n_rows, x, 0.0)     # mask ragged tail rows
        sum_ref[...] += jnp.sum(x, axis=0, keepdims=True)
        sumsq_ref[...] += jnp.sum(x * x, axis=0, keepdims=True)


def _normalize_kernel(mix_ref, mbn_ref, vbn_ref, x_ref, w_ref, b_ref, o_ref):
    """Tiled pass 2: per-row LN stats + switchable mix + normalize + affine.

    The partial last tile needs no masking: each output row depends only on its
    own input row plus the (1,C) batch stats, and Pallas discards the
    out-of-bounds rows of the final write.
    """
    x = x_ref[...].astype(jnp.float32)
    c = x.shape[1]

    row_sum = jnp.sum(x, axis=1, keepdims=True)
    row_sumsq = jnp.sum(x * x, axis=1, keepdims=True)
    mean_ln = row_sum * (1.0 / c)
    var_ln = jnp.maximum(
        (row_sumsq - c * mean_ln * mean_ln) * (1.0 / max(c - 1, 1)), 0.0)

    mw0, mw1, vw0, vw1 = mix_ref[0], mix_ref[1], mix_ref[2], mix_ref[3]
    mean = mw0 * mean_ln + mw1 * mbn_ref[...]
    var = vw0 * var_ln + vw1 * vbn_ref[...]
    x_hat = (x - mean) * jax.lax.rsqrt(var + EPS)
    o_ref[...] = (x_hat * w_ref[...].astype(jnp.float32)
                  + b_ref[...].astype(jnp.float32)).astype(o_ref.dtype)


# ----------------------------------------------------------------------------
# Wrapper
# ----------------------------------------------------------------------------
def switchnorm1d_forward(x, weight, bias, mean_weight, var_weight,
                         running_mean, running_var,
                         tile_n=None, force_tiled=False):
    """Training-mode SwitchNorm1d forward.

    Returns (y, new_running_mean, new_running_var).  The running-stat momentum
    update reuses the batch-norm statistics produced by the Pallas kernels —
    x is never re-read in plain JAX, and x is never padded or sliced.
    """
    n, c = x.shape
    vmem_limit = _vmem_budget_bytes()

    # Softmax over the 2-element switch weights; pack into one (4,) SMEM operand.
    mw = jax.nn.softmax(mean_weight.astype(jnp.float32))
    vw = jax.nn.softmax(var_weight.astype(jnp.float32))
    mix = jnp.concatenate([mw, vw])

    # Fused window sized from the real working set (~8x f32(x)) against the
    # generation-aware budget: ~6 MiB of f32(x) on v7x, ~12 MiB on v5e/v6e.
    use_fused = (not force_tiled) and (n * c * 4 * 8 <= vmem_limit)

    if use_fused:
        y, new_rm, new_rv = pl.pallas_call(
            _fused_kernel,
            out_shape=(
                jax.ShapeDtypeStruct((n, c), x.dtype),
                jax.ShapeDtypeStruct((1, c), jnp.float32),
                jax.ShapeDtypeStruct((1, c), jnp.float32),
            ),
            in_specs=[
                pl.BlockSpec(memory_space=pltpu.MemorySpace.SMEM),   # mixing weights
                pl.BlockSpec((n, c), lambda: (0, 0)),                # x
                pl.BlockSpec((1, c), lambda: (0, 0)),                # weight
                pl.BlockSpec((1, c), lambda: (0, 0)),                # bias
                pl.BlockSpec((1, c), lambda: (0, 0)),                # running_mean
                pl.BlockSpec((1, c), lambda: (0, 0)),                # running_var
            ],
            out_specs=(
                pl.BlockSpec((n, c), lambda: (0, 0)),
                pl.BlockSpec((1, c), lambda: (0, 0)),
                pl.BlockSpec((1, c), lambda: (0, 0)),
            ),
            compiler_params=pltpu.CompilerParams(vmem_limit_bytes=vmem_limit),
        )(mix, x, weight, bias,
          running_mean.astype(jnp.float32), running_var.astype(jnp.float32))
        return y, new_rm, new_rv

    # ---------------- Tiled two-pass path (no pad, no slice) -----------------
    tn = tile_n if tile_n is not None else _default_tile_n(c, vmem_limit)
    tn = max(8, (tn // 8) * 8)
    tn = min(tn, _round_up(n, 8))
    num_tiles = _cdiv(n, tn)
    n_split = 2 if num_tiles >= 2 else 1       # v7x: pass 1 split across both TCs
    steps_per_core = _cdiv(num_tiles, n_split)

    def _x_stats_map(core, step):
        # Clamp so the DMA of the (at most one) overhang tile on the second core
        # stays in-bounds; its accumulation is skipped in-kernel via pl.when.
        return (jnp.minimum(core * steps_per_core + step, num_tiles - 1), 0)

    # Pass 1: per-core (n_split, C) partial column sums / sums-of-squares.
    col_sum, col_sumsq = pl.pallas_call(
        functools.partial(_bn_stats_kernel, n_rows=n),
        grid=(n_split, steps_per_core),
        out_shape=(
            jax.ShapeDtypeStruct((n_split, c), jnp.float32),
            jax.ShapeDtypeStruct((n_split, c), jnp.float32),
        ),
        in_specs=[pl.BlockSpec((tn, c), _x_stats_map)],
        out_specs=(
            pl.BlockSpec((1, c), lambda core, step: (core, 0)),
            pl.BlockSpec((1, c), lambda core, step: (core, 0)),
        ),
        compiler_params=pltpu.CompilerParams(
            dimension_semantics=("parallel", "arbitrary"),
            vmem_limit_bytes=vmem_limit),
    )(x)

    # Tiny (1, C) finalization (true n, unbiased, clamped) + momentum update.
    col_sum = jnp.sum(col_sum, axis=0, keepdims=True)
    col_sumsq = jnp.sum(col_sumsq, axis=0, keepdims=True)
    mean_bn = col_sum * (1.0 / n)
    var_bn = jnp.maximum(
        (col_sumsq - n * mean_bn * mean_bn) * (1.0 / max(n - 1, 1)), 0.0)

    # Pass 2: pipelined, row-parallel normalization of (tn, C) tiles.
    y = pl.pallas_call(
        _normalize_kernel,
        grid=(num_tiles,),
        out_shape=jax.ShapeDtypeStruct((n, c), x.dtype),
        in_specs=[
            pl.BlockSpec(memory_space=pltpu.MemorySpace.SMEM),   # mixing weights
            pl.BlockSpec((1, c), lambda i: (0, 0)),              # mean_bn
            pl.BlockSpec((1, c), lambda i: (0, 0)),              # var_bn
            pl.BlockSpec((tn, c), lambda i: (i, 0)),             # x tile
            pl.BlockSpec((1, c), lambda i: (0, 0)),              # weight
            pl.BlockSpec((1, c), lambda i: (0, 0)),              # bias
        ],
        out_specs=pl.BlockSpec((tn, c), lambda i: (i, 0)),
        compiler_params=pltpu.CompilerParams(
            dimension_semantics=("parallel",),
            vmem_limit_bytes=vmem_limit),
    )(mix, mean_bn, var_bn, x, weight, bias)

    new_rm = running_mean.astype(jnp.float32) * MOMENTUM + (1.0 - MOMENTUM) * mean_bn
    new_rv = running_var.astype(jnp.float32) * MOMENTUM + (1.0 - MOMENTUM) * var_bn
    return y, new_rm, new_rv


# ----------------------------------------------------------------------------
# Pure-JAX reference of the PyTorch forward (training mode)
# ----------------------------------------------------------------------------
def _reference(x, weight, bias, mean_weight, var_weight):
    xf = x.astype(jnp.float32)
    n, c = xf.shape
    mean_ln = jnp.mean(xf, axis=1, keepdims=True)
    var_ln = jnp.sum((xf - mean_ln) ** 2, axis=1, keepdims=True) / (c - 1)
    mean_bn = jnp.mean(xf, axis=0, keepdims=True)
    var_bn = jnp.sum((xf - mean_bn) ** 2, axis=0, keepdims=True) / (n - 1)
    mw = jax.nn.softmax(mean_weight.astype(jnp.float32))
    vw = jax.nn.softmax(var_weight.astype(jnp.float32))
    mean = mw[0] * mean_ln + mw[1] * mean_bn
    var = vw[0] * var_ln + vw[1] * var_bn
    y = (xf - mean) / jnp.sqrt(var + EPS) * weight + bias
    return y.astype(x.dtype), mean_bn, var_bn


if __name__ == "__main__":
    key = jax.random.PRNGKey(0)
    k1, k2, k3, k4, k5, k6 = jax.random.split(key, 6)

    num_features = 32
    weight = 1.0 + 0.1 * jax.random.normal(k3, (1, num_features), jnp.float32)
    bias = 0.1 * jax.random.normal(k4, (1, num_features), jnp.float32)
    mean_weight = jax.random.normal(k5, (2,), jnp.float32)
    var_weight = jax.random.normal(k6, (2,), jnp.float32)
    running_mean = jnp.zeros((1, num_features), jnp.float32)
    running_var = jnp.ones((1, num_features), jnp.float32)

    # ---- Fused single-block path (small N*C) ----
    batch = 8
    x = jax.random.normal(k1, (batch, num_features), dtype=jnp.float32)
    y, rm, rv = switchnorm1d_forward(
        x, weight, bias, mean_weight, var_weight, running_mean, running_var)
    jax.block_until_ready((y, rm, rv))

    y_ref, mbn_ref, vbn_ref = _reference(x, weight, bias, mean_weight, var_weight)
    rm_ref = running_mean * MOMENTUM + (1.0 - MOMENTUM) * mbn_ref
    rv_ref = running_var * MOMENTUM + (1.0 - MOMENTUM) * vbn_ref
    assert jnp.allclose(y, y_ref, atol=1e-4, rtol=1e-4), "fused: y mismatch"
    assert jnp.allclose(rm, rm_ref, atol=1e-5, rtol=1e-5), "fused: running_mean mismatch"
    assert jnp.allclose(rv, rv_ref, atol=1e-5, rtol=1e-5), "fused: running_var mismatch"

    # ---- Tiled two-pass path: ragged N (37 rows, tile 8) exercises the in-kernel
    #      tail masking, the two-core split with a clamped overhang tile, and the
    #      discarded out-of-bounds writes of the partial output block. ----
    batch2 = 37
    x2 = jax.random.normal(k2, (batch2, num_features), dtype=jnp.float32)
    y2, rm2, rv2 = switchnorm1d_forward(
        x2, weight, bias, mean_weight, var_weight, running_mean, running_var,
        tile_n=8, force_tiled=True)
    jax.block_until_ready((y2, rm2, rv2))

    y2_ref, mbn2_ref, vbn2_ref = _reference(x2, weight, bias, mean_weight, var_weight)
    rm2_ref = running_mean * MOMENTUM + (1.0 - MOMENTUM) * mbn2_ref
    rv2_ref = running_var * MOMENTUM + (1.0 - MOMENTUM) * vbn2_ref
    assert jnp.allclose(y2, y2_ref, atol=1e-4, rtol=1e-4), "tiled: y mismatch"
    assert jnp.allclose(rm2, rm2_ref, atol=1e-5, rtol=1e-5), "tiled: running_mean mismatch"
    assert jnp.allclose(rv2, rv2_ref, atol=1e-5, rtol=1e-5), "tiled: running_var mismatch"

    # ---- Tiled path, divisible N (sanity) ----
    batch3 = 32
    x3 = jax.random.normal(jax.random.PRNGKey(7), (batch3, num_features), jnp.float32)
    y3, rm3, rv3 = switchnorm1d_forward(
        x3, weight, bias, mean_weight, var_weight, running_mean, running_var,
        tile_n=8, force_tiled=True)
    jax.block_until_ready((y3, rm3, rv3))
    y3_ref, mbn3_ref, vbn3_ref = _reference(x3, weight, bias, mean_weight, var_weight)
    assert jnp.allclose(y3, y3_ref, atol=1e-4, rtol=1e-4), "tiled/divisible: y mismatch"

    print("KERNEL_OK")
</pallas_src>

<mosaic_0001>
module attributes {stable_mosaic.version = 11 : i64} {
  func.func @_fused_kernel(%arg0: memref<4xf32, #tpu.memory_space<smem>>, %arg1: memref<8x32xf32, #tpu.memory_space<vmem>>, %arg2: memref<1x32xf32, #tpu.memory_space<vmem>>, %arg3: memref<1x32xf32, #tpu.memory_space<vmem>>, %arg4: memref<1x32xf32, #tpu.memory_space<vmem>>, %arg5: memref<1x32xf32, #tpu.memory_space<vmem>>, %arg6: memref<8x32xf32, #tpu.memory_space<vmem>>, %arg7: memref<1x32xf32, #tpu.memory_space<vmem>>, %arg8: memref<1x32xf32, #tpu.memory_space<vmem>>) attributes {dimension_semantics = [], scalar_prefetch = 0 : i64, scratch_operands = 0 : i64, tpu.core_type = #tpu.core_type<tc>} {
    %c0 = arith.constant 0 : index
    %c0_0 = arith.constant 0 : index
    %0 = vector.load %arg1[%c0, %c0_0] : memref<8x32xf32, #tpu.memory_space<vmem>>, vector<8x32xf32>
    %1 = arith.mulf %0, %0 : vector<8x32xf32>
    %cst = arith.constant dense<0.000000e+00> : vector<8xf32>
    %2 = vector.multi_reduction <add>, %0, %cst [1] : vector<8x32xf32> to vector<8xf32>
    %3 = vector.shape_cast %2 : vector<8xf32> to vector<8x1xf32>
    %cst_1 = arith.constant 3.125000e-02 : f32
    %4 = vector.broadcast %cst_1 : f32 to vector<8x1xf32>
    %5 = arith.mulf %3, %4 : vector<8x1xf32>
    %cst_2 = arith.constant dense<0.000000e+00> : vector<8xf32>
    %6 = vector.multi_reduction <add>, %1, %cst_2 [1] : vector<8x32xf32> to vector<8xf32>
    %7 = vector.shape_cast %6 : vector<8xf32> to vector<8x1xf32>
    %cst_3 = arith.constant 3.200000e+01 : f32
    %8 = vector.broadcast %cst_3 : f32 to vector<8x1xf32>
    %9 = arith.mulf %8, %5 : vector<8x1xf32>
    %10 = arith.mulf %9, %5 : vector<8x1xf32>
    %11 = arith.subf %7, %10 : vector<8x1xf32>
    %cst_4 = arith.constant 0.0322580636 : f32
    %12 = vector.broadcast %cst_4 : f32 to vector<8x1xf32>
    %13 = arith.mulf %11, %12 : vector<8x1xf32>
    %cst_5 = arith.constant 0.000000e+00 : f32
    %14 = vector.broadcast %cst_5 : f32 to vector<8x1xf32>
    %15 = arith.maximumf %13, %14 : vector<8x1xf32>
    %cst_6 = arith.constant dense<0.000000e+00> : vector<32xf32>
    %16 = vector.multi_reduction <add>, %0, %cst_6 [0] : vector<8x32xf32> to vector<32xf32>
    %17 = vector.shape_cast %16 : vector<32xf32> to vector<1x32xf32>
    %cst_7 = arith.constant 1.250000e-01 : f32
    %18 = vector.broadcast %cst_7 : f32 to vector<1x32xf32>
    %19 = arith.mulf %17, %18 : vector<1x32xf32>
    %cst_8 = arith.constant dense<0.000000e+00> : vector<32xf32>
    %20 = vector.multi_reduction <add>, %1, %cst_8 [0] : vector<8x32xf32> to vector<32xf32>
    %21 = vector.shape_cast %20 : vector<32xf32> to vector<1x32xf32>
    %cst_9 = arith.constant 8.000000e+00 : f32
    %22 = vector.broadcast %cst_9 : f32 to vector<1x32xf32>
    %23 = arith.mulf %22, %19 : vector<1x32xf32>
    %24 = arith.mulf %23, %19 : vector<1x32xf32>
    %25 = arith.subf %21, %24 : vector<1x32xf32>
    %cst_10 = arith.constant 0.142857149 : f32
    %26 = vector.broadcast %cst_10 : f32 to vector<1x32xf32>
    %27 = arith.mulf %25, %26 : vector<1x32xf32>
    %cst_11 = arith.constant 0.000000e+00 : f32
    %28 = vector.broadcast %cst_11 : f32 to vector<1x32xf32>
    %29 = arith.maximumf %27, %28 : vector<1x32xf32>
    %c0_12 = arith.constant 0 : index
    %c0_13 = arith.constant 0 : index
    %30 = vector.load %arg4[%c0_12, %c0_13] : memref<1x32xf32, #tpu.memory_space<vmem>>, vector<1x32xf32>
    %cst_14 = arith.constant 0.996999979 : f32
    %31 = vector.broadcast %cst_14 : f32 to vector<1x32xf32>
    %32 = arith.mulf %31, %30 : vector<1x32xf32>
    %cst_15 = arith.constant 3.000000e-03 : f32
    %33 = vector.broadcast %cst_15 : f32 to vector<1x32xf32>
    %34 = arith.mulf %33, %19 : vector<1x32xf32>
    %35 = arith.addf %32, %34 : vector<1x32xf32>
    %c0_16 = arith.constant 0 : index
    %c0_17 = arith.constant 0 : index
    %36 = vector.load %arg7[%c0_16, %c0_17] : memref<1x32xf32, #tpu.memory_space<vmem>>, vector<1x32xf32>
    tpu.vector_store %arg7[%c0_16, %c0_17], %35 {strides = array<i32>} : memref<1x32xf32, #tpu.memory_space<vmem>>, vector<1x32xf32>,
    %c0_18 = arith.constant 0 : index
    %c0_19 = arith.constant 0 : index
    %37 = vector.load %arg5[%c0_18, %c0_19] : memref<1x32xf32, #tpu.memory_space<vmem>>, vector<1x32xf32>
    %cst_20 = arith.constant 0.996999979 : f32
    %38 = vector.broadcast %cst_20 : f32 to vector<1x32xf32>
    %39 = arith.mulf %38, %37 : vector<1x32xf32>
    %cst_21 = arith.constant 3.000000e-03 : f32
    %40 = vector.broadcast %cst_21 : f32 to vector<1x32xf32>
    %41 = arith.mulf %40, %29 : vector<1x32xf32>
    %42 = arith.addf %39, %41 : vector<1x32xf32>
    %c0_22 = arith.constant 0 : index
    %c0_23 = arith.constant 0 : index
    %43 = vector.load %arg8[%c0_22, %c0_23] : memref<1x32xf32, #tpu.memory_space<vmem>>, vector<1x32xf32>
    tpu.vector_store %arg8[%c0_22, %c0_23], %42 {strides = array<i32>} : memref<1x32xf32, #tpu.memory_space<vmem>>, vector<1x32xf32>,
    %c0_24 = arith.constant 0 : index
    %44 = memref.load %arg0[%c0_24] : memref<4xf32, #tpu.memory_space<smem>>
    %c1 = arith.constant 1 : index
    %45 = memref.load %arg0[%c1] : memref<4xf32, #tpu.memory_space<smem>>
    %c2 = arith.constant 2 : index
    %46 = memref.load %arg0[%c2] : memref<4xf32, #tpu.memory_space<smem>>
    %c3 = arith.constant 3 : index
    %47 = memref.load %arg0[%c3] : memref<4xf32, #tpu.memory_space<smem>>
    %48 = vector.broadcast %44 : f32 to vector<8x1xf32>
    %49 = arith.mulf %48, %5 : vector<8x1xf32>
    %50 = vector.broadcast %45 : f32 to vector<1x32xf32>
    %51 = arith.mulf %50, %19 : vector<1x32xf32>
    %52 = vector.broadcast %49 : vector<8x1xf32> to vector<8x32xf32>
    %53 = vector.broadcast %51 : vector<1x32xf32> to vector<8x32xf32>
    %54 = arith.addf %52, %53 : vector<8x32xf32>
    %55 = vector.broadcast %46 : f32 to vector<8x1xf32>
    %56 = arith.mulf %55, %15 : vector<8x1xf32>
    %57 = vector.broadcast %47 : f32 to vector<1x32xf32>
    %58 = arith.mulf %57, %29 : vector<1x32xf32>
    %59 = vector.broadcast %56 : vector<8x1xf32> to vector<8x32xf32>
    %60 = vector.broadcast %58 : vector<1x32xf32> to vector<8x32xf32>
    %61 = arith.addf %59, %60 : vector<8x32xf32>
    %62 = arith.subf %0, %54 : vector<8x32xf32>
    %cst_25 = arith.constant 9.99999974E-6 : f32
    %63 = vector.broadcast %cst_25 : f32 to vector<8x32xf32>
    %64 = arith.addf %61, %63 : vector<8x32xf32>
    %65 = math.rsqrt %64 : vector<8x32xf32>
    %66 = arith.mulf %62, %65 : vector<8x32xf32>
    %c0_26 = arith.constant 0 : index
    %c0_27 = arith.constant 0 : index
    %67 = vector.load %arg2[%c0_26, %c0_27] : memref<1x32xf32, #tpu.memory_space<vmem>>, vector<1x32xf32>
    %68 = vector.broadcast %67 : vector<1x32xf32> to vector<8x32xf32>
    %69 = arith.mulf %66, %68 : vector<8x32xf32>
    %c0_28 = arith.constant 0 : index
    %c0_29 = arith.constant 0 : index
    %70 = vector.load %arg3[%c0_28, %c0_29] : memref<1x32xf32, #tpu.memory_space<vmem>>, vector<1x32xf32>
    %71 = vector.broadcast %70 : vector<1x32xf32> to vector<8x32xf32>
    %72 = arith.addf %69, %71 : vector<8x32xf32>
    %c0_30 = arith.constant 0 : index
    %c0_31 = arith.constant 0 : index
    %73 = vector.load %arg6[%c0_30, %c0_31] : memref<8x32xf32, #tpu.memory_space<vmem>>, vector<8x32xf32>
    tpu.vector_store %arg6[%c0_30, %c0_31], %72 {strides = array<i32>} : memref<8x32xf32, #tpu.memory_space<vmem>>, vector<8x32xf32>,
    return
  }
}

</mosaic_0001>

<llo_original>
// kernel: tpu_custom_call.1
$region0: #{tpu_custom_call.1}
  #allocation0 [shape = 'u32[]', space=smem, size = 0x4, offset = 0x4, fixed_abs, tag = 'smem constant byte address 0x4 - core index']
  #allocation1 [shape = 'u32[144,128]{1,0:T(1,128)}', space=vmem, size = 0x12000, scoped, tag = 'internal scratch']
  %s0 = inlined_call_operand.hbm [shape: f32[4], index: 0, kind: input, shape index: {}]
  %s1 = inlined_call_operand.hbm [shape: f32[8,32], index: 1, kind: input, shape index: {}]
  %s2 = inlined_call_operand.vmem [shape: f32[1,32], index: 2, kind: input, shape index: {}]
  %s3 = inlined_call_operand.vmem [shape: f32[1,32], index: 3, kind: input, shape index: {}]
  %s4 = inlined_call_operand.vmem [shape: f32[1,32], index: 4, kind: input, shape index: {}]
  %s5 = inlined_call_operand.vmem [shape: f32[1,32], index: 5, kind: input, shape index: {}]
  %s6 = inlined_call_operand.hbm [shape: f32[8,32], index: 6, kind: output, shape index: {0}]
  %s7 = inlined_call_operand.hbm [shape: f32[1,32], index: 7, kind: output, shape index: {1}]
  %s8 = inlined_call_operand.hbm [shape: f32[1,32], index: 8, kind: output, shape index: {2}]
  %9 = xla_tuple %s6, %s7, %s8
  %s10 = sld [smem:[#allocation0]]
  $region58: #{tpu_custom_call.1} parent=0
    _
  %s12 = ssub.s32 1, %s10
  %s13 = scalar_select 0, %s12, %s10
  $region1: #{tpu_custom_call.1} parent=0
    #allocation2 [shape = 'u8[512]{0}', space=smem, size = 0x200, scoped, tag = 'input window, operand 0, single buffered']
    #allocation3 [shape = 's32[1]{0}', space=sflag, size = 0x4, scoped, tag = 'scoped memory for tpu_custom_call.1']
    #allocation4 [shape = 's32[1]{0}', space=sflag, size = 0x4, scoped, tag = 'scoped memory for tpu_custom_call.1']
    #allocation5 [shape = 's32[1]{0}', space=sflag, size = 0x4, scoped, tag = 'scoped memory for tpu_custom_call.1']
    #allocation6 [shape = 'u8[4096]{0}', space=vmem, size = 0x1000, scoped, tag = 'input window, operand 1, single buffered']
    #allocation7 [shape = 'u8[4096]{0}', space=vmem, size = 0x1000, scoped, tag = 'output window, operand 0, single buffered']
    #allocation8 [shape = 'u8[512]{0}', space=vmem, size = 0x400, scoped, tag = 'output window, operand 1, single buffered']
    #allocation9 [shape = 's32[1]{0}', space=sflag, size = 0x4, scoped, tag = 'scoped memory for tpu_custom_call.1']
    #allocation10 [shape = 'u8[512]{0}', space=vmem, size = 0x400, scoped, tag = 'output window, operand 2, single buffered']
    %14 = vsyncpa [#allocation5], 0
    %15 = vsyncpa [#allocation3], 0
    %16 = vsyncpa [#allocation4], 0
    %17 = vsyncpa [#allocation9], 0
    // Predicated region
    $region2: #{tpu_custom_call.1} parent=1 // pred_check
      _
    $region3: #{tpu_custom_call.1} parent=1 // pred_check_branch
      %19 = sbr.rel (0) target = $region5
    $region4: #{tpu_custom_call.1} parent=1 // pred_region
      %s21 = ssub.s32 16, 16
      %22 = vsyncadd [#allocation5], %s21
      %25 = dma.hbm_to_smem %s0, 16, [#allocation2], [#allocation5]
    $region5: #{tpu_custom_call.1} parent=1 // pred_fallthru
      _
    // Predicated region
    $region6: #{tpu_custom_call.1} parent=1 // pred_check
      _
    $region7: #{tpu_custom_call.1} parent=1 // pred_check_branch
      %27 = sbr.rel (0) target = $region9
    $region8: #{tpu_custom_call.1} parent=1 // pred_region
      %s29 = ssub.s32 128, 128
      %30 = vsyncadd [#allocation3], %s29
      %s32 = sshll.u32 [#allocation6], 4
      %s33 = int_to_ptr.vmem [resolvable:$true] %s32
      %35 = dma.hbm_to_vmem [thread:$0]  %s1, 128, %s33, [#allocation3]
    $region9: #{tpu_custom_call.1} parent=1 // pred_fallthru
      _
    // Predicated region
    $region10: #{tpu_custom_call.1} parent=1 // pred_check
      _
    $region11: #{tpu_custom_call.1} parent=1 // pred_check_branch
      %37 = sbr.rel (0) target = $region13
    $region12: #{tpu_custom_call.1} parent=1 // pred_region
      _
    $region13: #{tpu_custom_call.1} parent=1 // pred_fallthru
      _
    // Predicated region
    $region14: #{tpu_custom_call.1} parent=1 // pred_check
      _
    $region15: #{tpu_custom_call.1} parent=1 // pred_check_branch
      %39 = sbr.rel (0) target = $region17
    $region16: #{tpu_custom_call.1} parent=1 // pred_region
      _
    $region17: #{tpu_custom_call.1} parent=1 // pred_fallthru
      _
    // Predicated region
    $region18: #{tpu_custom_call.1} parent=1 // pred_check
      _
    $region19: #{tpu_custom_call.1} parent=1 // pred_check_branch
      %41 = sbr.rel (0) target = $region21
    $region20: #{tpu_custom_call.1} parent=1 // pred_region
      _
    $region21: #{tpu_custom_call.1} parent=1 // pred_fallthru
      _
    // Predicated region
    $region22: #{tpu_custom_call.1} parent=1 // pred_check
      _
    $region23: #{tpu_custom_call.1} parent=1 // pred_check_branch
      %43 = sbr.rel (0) target = $region25
    $region24: #{tpu_custom_call.1} parent=1 // pred_region
      _
    $region25: #{tpu_custom_call.1} parent=1 // pred_fallthru
      _
    // Predicated region
    $region26: #{tpu_custom_call.1} parent=1 // pred_check
      _
    $region27: #{tpu_custom_call.1} parent=1 // pred_check_branch
      %45 = sbr.rel (0) target = $region29
    $region28: #{tpu_custom_call.1} parent=1 // pred_region
      %46 = dma.done [#allocation5], 16
    $region29: #{tpu_custom_call.1} parent=1 // pred_fallthru
      _
    // Predicated region
    $region30: #{tpu_custom_call.1} parent=1 // pred_check
      _
    $region31: #{tpu_custom_call.1} parent=1 // pred_check_branch
      %48 = sbr.rel (0) target = $region33
    $region32: #{tpu_custom_call.1} parent=1 // pred_region
      %49 = dma.done [#allocation3], 128
    $region33: #{tpu_custom_call.1} parent=1 // pred_fallthru
      _
    %50 = sfence
    %v51 = vld [vmem:[#allocation6] sm:$0xff]
    %v52 = vmul.f32 %v51, %v51
    %vm53 = vcmask 261120
    %v54 = vsel %vm53, %v51, 0.0
    %55 = vadd.xlane.f32.xlu0 %v54
    %v56 = vpop.xlane.xlu0 %55
    %v57 = vmul.f32 %v56, 0.03125
    %v58 = vsel %vm53, %v52, 0.0
    %59 = vadd.xlane.f32.xlu0 %v58
    %v60 = vpop.xlane.xlu0 %59
    %v61 = vmul.f32 %v57, 32.0
    %v62 = vmul.f32 %v61, %v57
    %v63 = vsub.f32 %v60, %v62
    %v64 = vmul.f32 %v63, 0.032258064
    %v65 = vmax.f32 %v64, 0.0
    %v66 = vrot.slane %v54, 4
    %v67 = vadd.f32 %v54, %v66
    %v68 = vrot.slane %v67, 2
    %v69 = vadd.f32 %v67, %v68
    %v70 = vrot.slane %v69, 1
    %v71 = vadd.f32 %v69, %v70
    %v72 = vmul.f32 %v71, 0.125
    %v73 = vrot.slane %v58, 4
    %v74 = vadd.f32 %v58, %v73
    %v75 = vrot.slane %v74, 2
    %v76 = vadd.f32 %v74, %v75
    %v77 = vrot.slane %v76, 1
    %v78 = vadd.f32 %v76, %v77
    %v79 = vmul.f32 %v72, 8.0
    %v80 = vmul.f32 %v79, %v72
    %v81 = vsub.f32 %v78, %v80
    %v82 = vmul.f32 %v81, 0.14285715
    %v83 = vmax.f32 %v82, 0.0
    %v84 = vld [vmem:[%s4] sm:$0x1]
    %v85 = vmul.f32 %v84, 0.997
    %v86 = vmul.f32 %v72, 0.003
    %v87 = vadd.f32 %v85, %v86
    %vm88 = vcmask 253952
    %89 = vst.msk [vmem:[#allocation8] sm:$0x1] %vm88, %v87
    %v90 = vld [vmem:[%s5] sm:$0x1]
    %v91 = vmul.f32 %v90, 0.997
    %v92 = vmul.f32 %v83, 0.003
    %v93 = vadd.f32 %v91, %v92
    %94 = vst.msk [vmem:[#allocation10] sm:$0x1] %vm88, %v93
    %s95 = sld [smem:[#allocation2]]
    %s96 = sld [smem:[#allocation2 + $0x1]]
    %s97 = sld [smem:[#allocation2 + $0x2]]
    %s98 = sld [smem:[#allocation2 + $0x3]]
    %v99 = vstv %s95
    %v100 = vmul.f32 %v99, %v57
    %v101 = vstv %s96
    %v102 = vmul.f32 %v101, %v72
    %v103 = vadd.f32 %v100, %v102
    %v104 = vstv %s97
    %v105 = vmul.f32 %v104, %v65
    %v106 = vstv %s98
    %v107 = vmul.f32 %v106, %v83
    %v108 = vadd.f32 %v105, %v107
    %v109 = vsub.f32 %v51, %v103
    %v110 = vadd.f32 %v108, 1e-05
    %v111 = vrsqrt.pop %v110
    %v112 = vmul.f32 %v109, %v111
    %v113 = vld [vmem:[%s2] sm:$0x1]
    %v115 = vlaneseq
    %v116 = vshrl.u32 %v115, 7
    %v117 = vsub.s32 0, %v116
    %v118 = vrot.slane %v113, %v117
    %v120 = vmul.f32 %v112, %v118
    %v121 = vld [vmem:[%s3] sm:$0x1]
    %v123 = vlaneseq
    %v124 = vshrl.u32 %v123, 7
    %v125 = vsub.s32 0, %v124
    %v126 = vrot.slane %v121, %v125
    %v128 = vadd.f32 %v120, %v126
    %129 = vst.msk [vmem:[#allocation7] sm:$0xff] %vm53, %v128
    // Predicated region
    $region34: #{tpu_custom_call.1} parent=1 // pred_check
      _
    $region35: #{tpu_custom_call.1} parent=1 // pred_check_branch
      %131 = sbr.rel (0) target = $region37
    $region36: #{tpu_custom_call.1} parent=1 // pred_region
      %s133 = ssub.s32 128, 128
      %134 = vsyncadd [#allocation4], %s133
      %s136 = sshll.u32 [#allocation7], 4
      %s137 = int_to_ptr.vmem [resolvable:$true] %s136
      %139 = dma.vmem_to_hbm [thread:$0]  %s137, 128, %s6, [#allocation4]
    $region37: #{tpu_custom_call.1} parent=1 // pred_fallthru
      _
    // Predicated region
    $region38: #{tpu_custom_call.1} parent=1 // pred_check
      _
    $region39: #{tpu_custom_call.1} parent=1 // pred_check_branch
      %141 = sbr.rel (0) target = $region41
    $region40: #{tpu_custom_call.1} parent=1 // pred_region
      %s143 = ssub.s32 16, 16
      %144 = vsyncadd [#allocation9], %s143
      %s146 = sshll.u32 [#allocation8], 4
      %s147 = int_to_ptr.vmem [resolvable:$true] %s146
      %149 = dma.vmem_to_hbm [thread:$0]  %s147, 16, %s7, [#allocation9]
    $region41: #{tpu_custom_call.1} parent=1 // pred_fallthru
      _
    // Predicated region
    $region42: #{tpu_custom_call.1} parent=1 // pred_check
      _
    $region43: #{tpu_custom_call.1} parent=1 // pred_check_branch
      %151 = sbr.rel (0) target = $region45
    $region44: #{tpu_custom_call.1} parent=1 // pred_region
      %s153 = ssub.s32 16, 16
      %154 = vsyncadd [#allocation9], %s153
      %s156 = sshll.u32 [#allocation10], 4
      %s157 = int_to_ptr.vmem [resolvable:$true] %s156
      %159 = dma.vmem_to_hbm [thread:$0]  %s157, 16, %s8, [#allocation9]
    $region45: #{tpu_custom_call.1} parent=1 // pred_fallthru
      _
    // Predicated region
    $region46: #{tpu_custom_call.1} parent=1 // pred_check
      _
    $region47: #{tpu_custom_call.1} parent=1 // pred_check_branch
      %161 = sbr.rel (0) target = $region49
    $region48: #{tpu_custom_call.1} parent=1 // pred_region
      %162 = dma.done [#allocation4], 128
    $region49: #{tpu_custom_call.1} parent=1 // pred_fallthru
      _
    // Predicated region
    $region50: #{tpu_custom_call.1} parent=1 // pred_check
      _
    $region51: #{tpu_custom_call.1} parent=1 // pred_check_branch
      %164 = sbr.rel (0) target = $region53
    $region52: #{tpu_custom_call.1} parent=1 // pred_region
      %165 = dma.done [#allocation9], 16
    $region53: #{tpu_custom_call.1} parent=1 // pred_fallthru
      _
    // Predicated region
    $region54: #{tpu_custom_call.1} parent=1 // pred_check
      _
    $region55: #{tpu_custom_call.1} parent=1 // pred_check_branch
      %167 = sbr.rel (0) target = $region57
    $region56: #{tpu_custom_call.1} parent=1 // pred_region
      %168 = dma.done [#allocation9], 16
    $region57: #{tpu_custom_call.1} parent=1 // pred_fallthru
      _
    %169 = vsyncpa [#allocation3], 1
    %170 = vsyncpa [#allocation4], 1
    %171 = vsyncpa [#allocation9], 1
    %172 = vsyncpa [#allocation5], 1

</llo_original>
